<compile_context>
chip_gen: v5e
topology: v5e:2x2
jax: 0.10.0
libtpu: 0.0.40
codegen_flags: <defaults>
</compile_context>

<pallas_src>
import functools

import jax
import jax.numpy as jnp
from jax.experimental import pallas as pl
from jax.experimental.pallas import tpu as pltpu


# ---------------------------------------------------------------------------
# Helpers
# ---------------------------------------------------------------------------
def _round_up(v: int, m: int) -> int:
    return ((v + m - 1) // m) * m


def _vmem_capacity_bytes() -> int:
    """Physical VMEM size (128 MiB on v5e/v6e, 64 MiB on v7x); conservative
    fallback if the query is unavailable."""
    try:
        cap = int(pltpu.get_tpu_info().vmem_capacity_bytes)
        if cap > 0:
            return cap
    except Exception:
        pass
    return 64 * 1024 * 1024


def _choose_lane_tile(hw: int, channels: int, itemsize: int, target_bytes: int) -> int:
    """Lane tile: a multiple of 128 (or the full HW extent when HW <= 128),
    sized so one (C, TL) input block is ~target_bytes.  Tail tiles are
    masked/padded, so HW need not be divisible by the tile."""
    if hw <= 128:
        return hw
    t = (target_bytes // (itemsize * max(channels, 1))) // 128 * 128
    return max(128, min(t, _round_up(hw, 128)))


# ---------------------------------------------------------------------------
# Fused pipelined path (activation staged in VMEM, 1 HBM read + 1 HBM write)
# ---------------------------------------------------------------------------
def _fused_path(x3, w_col, gamma, beta, eps, vmem_cap):
    N, C, HW = x3.shape
    itemsize = jnp.dtype(x3.dtype).itemsize
    TL = _choose_lane_tile(HW, C, itemsize,
                           target_bytes=min(vmem_cap // 32, 2 * 1024 * 1024))
    T = (HW + TL - 1) // TL
    M = N * HW
    last_n, last_j = N - 1, T - 1
    x_dtype = x3.dtype

    def kernel(scal_ref, x_ref, w_ref, o_ref, xstage, acc_s, acc_q, ss):
        p = pl.program_id(0)
        n = pl.program_id(1)
        j = pl.program_id(2)
        w = w_ref[...].astype(jnp.float32)                    # (C, 1)

        @pl.when(p == 0)
        def _stats_phase():
            @pl.when(jnp.logical_and(n == 0, j == 0))
            def _():
                acc_s[...] = jnp.zeros_like(acc_s)
                acc_q[...] = jnp.zeros_like(acc_q)

            xt = x_ref[0]                                     # (C, TL), input dtype
            xstage[n * T + j] = xt                            # stage in VMEM
            z = jnp.sum(xt.astype(jnp.float32) * w, axis=0, keepdims=True)  # (1, TL)
            if HW % TL != 0:
                lane = jax.lax.broadcasted_iota(jnp.int32, (1, TL), 1)
                z = jnp.where(j * TL + lane < HW, z, 0.0)
            acc_s[...] += z                                   # lane-wise accumulators
            acc_q[...] += z * z

        @pl.when(p == 1)
        def _apply_phase():
            @pl.when(jnp.logical_and(n == 0, j == 0))
            def _():
                mean = jnp.sum(acc_s[...]) / M
                # TODO(synk): E[z^2]-E[z]^2 can cancel when |mean| >> std; a
                # shifted/Welford combine would be more robust for extreme inputs.
                var = jnp.maximum(jnp.sum(acc_q[...]) / M - mean * mean, 0.0)
                scale = scal_ref[0] * jax.lax.rsqrt(var + scal_ref[2])
                ss[0] = scale
                ss[1] = scal_ref[1] - mean * scale            # conv bias cancels

            xt = xstage[n * T + j]                            # VMEM copy, no HBM re-read
            z = jnp.sum(xt.astype(jnp.float32) * w, axis=0, keepdims=True)
            a = jax.nn.sigmoid(z * ss[0] + ss[1])             # (1, TL), lane-dense
            o_ref[0] = (xt * a.astype(x_dtype)).astype(o_ref.dtype)

    scal = jnp.stack([gamma, beta, jnp.float32(eps)])
    return pl.pallas_call(
        kernel,
        out_shape=jax.ShapeDtypeStruct((N, C, HW), x3.dtype),
        grid_spec=pltpu.PrefetchScalarGridSpec(
            num_scalar_prefetch=1,
            grid=(2, N, T),
            in_specs=[
                # phase 0: stream tile (n, j); phase 1: stay parked on the last
                # block already in VMEM (no second HBM read of x).
                pl.BlockSpec((1, C, TL),
                             lambda p, n, j, s: (n * (1 - p) + last_n * p, 0,
                                                 j * (1 - p) + last_j * p)),
                pl.BlockSpec((C, 1), lambda p, n, j, s: (0, 0)),
            ],
            # phase 0: park on block (0,0,0) (never written); phase 1: write
            # block (n, j) -- each output block visited in one consecutive run.
            out_specs=pl.BlockSpec((1, C, TL),
                                   lambda p, n, j, s: (n * p, 0, j * p)),
            scratch_shapes=[
                pltpu.VMEM((N * T, C, TL), x3.dtype),         # staged activation
                pltpu.VMEM((1, TL), jnp.float32),             # lane-wise sum(z)
                pltpu.VMEM((1, TL), jnp.float32),             # lane-wise sum(z^2)
                pltpu.SMEM((2,), jnp.float32),                # folded BN scale/shift
            ],
        ),
        compiler_params=pltpu.CompilerParams(
            dimension_semantics=("arbitrary", "arbitrary", "arbitrary"),
            vmem_limit_bytes=min(vmem_cap * 3 // 4, 112 * 1024 * 1024),
        ),
    )(scal, x3, w_col)


# ---------------------------------------------------------------------------
# Tiled two-pass path (large activations)
# ---------------------------------------------------------------------------
def _tiled_path(x3, w_col, gamma, beta, eps, vmem_cap):
    N, C, HW = x3.shape
    itemsize = jnp.dtype(x3.dtype).itemsize
    TL = _choose_lane_tile(HW, C, itemsize, target_bytes=vmem_cap // 32)
    T = (HW + TL - 1) // TL
    M = N * HW
    tiled_vmem = min(vmem_cap * 3 // 8, 48 * 1024 * 1024)

    # ---- pass 1: per-(batch, tile) partial statistics of the conv logits ----
    # Both grid axes "parallel": each (n, j) writes its own partial sums, so
    # v7x's two TensorCores split the pass even when N == 1.
    def stats_kernel(x_ref, w_ref, sum_ref, sq_ref):
        j = pl.program_id(1)
        x = x_ref[0].astype(jnp.float32)                      # (C, TL)
        w = w_ref[...].astype(jnp.float32)                    # (C, 1)
        z = jnp.sum(x * w, axis=0, keepdims=True)             # (1, TL)
        if HW % TL != 0:
            lane = jax.lax.broadcasted_iota(jnp.int32, (1, TL), 1)
            z = jnp.where(j * TL + lane < HW, z, 0.0)
        sum_ref[...] = jnp.sum(z).reshape(1, 1, 1, 1)
        sq_ref[...] = jnp.sum(z * z).reshape(1, 1, 1, 1)

    part_sum, part_sq = pl.pallas_call(
        stats_kernel,
        out_shape=(
            jax.ShapeDtypeStruct((N, T, 1, 1), jnp.float32),
            jax.ShapeDtypeStruct((N, T, 1, 1), jnp.float32),
        ),
        grid_spec=pltpu.PrefetchScalarGridSpec(
            num_scalar_prefetch=0,
            grid=(N, T),
            in_specs=[
                pl.BlockSpec((1, C, TL), lambda n, j: (n, 0, j)),
                pl.BlockSpec((C, 1), lambda n, j: (0, 0)),
            ],
            out_specs=[
                pl.BlockSpec((1, 1, 1, 1), lambda n, j: (n, j, 0, 0)),
                pl.BlockSpec((1, 1, 1, 1), lambda n, j: (n, j, 0, 0)),
            ],
        ),
        compiler_params=pltpu.CompilerParams(
            dimension_semantics=("parallel", "parallel"),
            vmem_limit_bytes=tiled_vmem,
        ),
    )(x3, w_col)

    mean = jnp.sum(part_sum) / M
    # TODO(synk): E[z^2]-E[z]^2 can cancel when |mean| >> std; a shifted/Welford
    # combine over the per-tile partials would be more robust for extreme inputs.
    var = jnp.maximum(jnp.sum(part_sq) / M - mean * mean, 0.0)
    scale = gamma * jax.lax.rsqrt(var + eps)
    shift = beta - mean * scale                               # conv bias cancels
    scal = jnp.stack([scale, shift])

    # ---- pass 2: folded BN (single fma) + sigmoid + elementwise scale --------
    def apply_kernel(scal_ref, x_ref, w_ref, o_ref):
        x = x_ref[0]                                          # (C, TL), input dtype
        w = w_ref[...].astype(jnp.float32)
        z = jnp.sum(x.astype(jnp.float32) * w, axis=0, keepdims=True)
        a = jax.nn.sigmoid(z * scal_ref[0] + scal_ref[1])     # (1, TL), lane-dense
        o_ref[0] = (x * a.astype(x.dtype)).astype(o_ref.dtype)

    return pl.pallas_call(
        apply_kernel,
        out_shape=jax.ShapeDtypeStruct((N, C, HW), x3.dtype),
        grid_spec=pltpu.PrefetchScalarGridSpec(
            num_scalar_prefetch=1,
            grid=(N, T),
            in_specs=[
                pl.BlockSpec((1, C, TL), lambda n, j, s: (n, 0, j)),
                pl.BlockSpec((C, 1), lambda n, j, s: (0, 0)),
            ],
            out_specs=pl.BlockSpec((1, C, TL), lambda n, j, s: (n, 0, j)),
        ),
        compiler_params=pltpu.CompilerParams(
            dimension_semantics=("parallel", "parallel"),
            vmem_limit_bytes=tiled_vmem,
        ),
    )(scal, x3, w_col)


# ---------------------------------------------------------------------------
# Wrapper
# ---------------------------------------------------------------------------
@functools.partial(jax.jit, static_argnames=("eps", "fuse_bytes_limit"))
def global_attention(x, conv_w, conv_b, bn_gamma, bn_beta, *, eps=1e-5,
                     fuse_bytes_limit=None):
    N, C, H, W = x.shape
    HW = H * W
    itemsize = jnp.dtype(x.dtype).itemsize

    x3 = x.reshape(N, C, HW)                                  # metadata-only reshape
    w_col = jnp.asarray(conv_w, jnp.float32).reshape(C, 1)
    gamma = jnp.asarray(bn_gamma, jnp.float32).reshape(())
    beta = jnp.asarray(bn_beta, jnp.float32).reshape(())
    # TODO(synk): training-mode BatchNorm only (batch stats); the 1x1 conv bias
    # cancels against the batch mean.  Eval-mode (running stats) would need the
    # bias and running mean/var plumbed through instead.
    del conv_b

    vmem_cap = _vmem_capacity_bytes()
    if fuse_bytes_limit is None:
        # ~16 MiB of x on v5e/v6e (128 MiB VMEM), ~8 MiB on v7x (64 MiB VMEM).
        fuse_bytes_limit = vmem_cap // 8
    x_bytes = N * C * HW * itemsize

    if x_bytes <= fuse_bytes_limit:
        out3 = _fused_path(x3, w_col, gamma, beta, eps, vmem_cap)
    else:
        out3 = _tiled_path(x3, w_col, gamma, beta, eps, vmem_cap)
    return out3.reshape(N, C, H, W)


# ---------------------------------------------------------------------------
# Pure-JAX reference (mirrors the PyTorch forward in training mode)
# ---------------------------------------------------------------------------
def reference(x, conv_w, conv_b, bn_gamma, bn_beta, eps=1e-5):
    z = jnp.einsum("nchw,c->nhw", x, conv_w.reshape(-1)) + conv_b
    z = z[:, None, :, :]                                      # (N, 1, H, W)
    mean = jnp.mean(z)
    var = jnp.mean((z - mean) ** 2)                           # biased variance
    y = (z - mean) / jnp.sqrt(var + eps) * bn_gamma + bn_beta
    return x * jax.nn.sigmoid(y)


if __name__ == "__main__":
    key = jax.random.PRNGKey(0)
    kx, kw = jax.random.split(key)

    N, C, H, W = 2, 4, 16, 16
    x = jax.random.normal(kx, (N, C, H, W), dtype=jnp.float32)

    # Conv2d(C, 1, kernel_size=1) + BatchNorm2d(1) parameters
    conv_w = jax.random.normal(kw, (1, C, 1, 1), dtype=jnp.float32) * 0.5
    conv_b = jnp.float32(0.1)
    bn_gamma = jnp.float32(1.0)   # BatchNorm2d default init
    bn_beta = jnp.float32(0.0)
    eps = 1e-5

    ref = reference(x, conv_w, conv_b, bn_gamma, bn_beta, eps=eps)

    # Fused pipelined path (activation fits in VMEM).
    out_fused = global_attention(x, conv_w, conv_b, bn_gamma, bn_beta, eps=eps)
    out_fused = jax.block_until_ready(out_fused)
    assert out_fused.shape == (N, C, H, W)
    assert jnp.allclose(out_fused, ref, atol=1e-5, rtol=1e-5), "fused mismatch vs reference"

    # Tiled two-pass path (forced, exercises the large-activation code path).
    out_tiled = global_attention(x, conv_w, conv_b, bn_gamma, bn_beta, eps=eps,
                                 fuse_bytes_limit=0)
    out_tiled = jax.block_until_ready(out_tiled)
    assert jnp.allclose(out_tiled, ref, atol=1e-5, rtol=1e-5), "tiled mismatch vs reference"

    print("KERNEL_OK")
</pallas_src>

<mosaic_0001>
module attributes {stable_mosaic.version = 11 : i64} {
  func.func @kernel(%arg0: i32, %arg1: i32, %arg2: i32, %arg3: memref<3xf32, #tpu.memory_space<smem>>, %arg4: memref<1x4x256xf32, #tpu.memory_space<vmem>>, %arg5: memref<4x1xf32, #tpu.memory_space<vmem>>, %arg6: memref<1x4x256xf32, #tpu.memory_space<vmem>>, %arg7: memref<2x4x256xf32, #tpu.memory_space<vmem>>, %arg8: memref<1x256xf32, #tpu.memory_space<vmem>>, %arg9: memref<1x256xf32, #tpu.memory_space<vmem>>, %arg10: memref<2xf32, #tpu.memory_space<smem>>) attributes {dimension_semantics = [#tpu.dimension_semantics<arbitrary>, #tpu.dimension_semantics<arbitrary>, #tpu.dimension_semantics<arbitrary>], iteration_bounds = array<i64: 2, 2, 1>, scalar_prefetch = 1 : i64, scratch_operands = 4 : i64, tpu.core_type = #tpu.core_type<tc>, window_params = [{transform_indices = @transform_0, window_bounds = array<i64: 1, 4, 256>}, {pipeline_mode = #tpu.pipeline_mode<synchronous>, transform_indices = @transform_1, window_bounds = array<i64: 4, 1>}, {transform_indices = @transform_2, window_bounds = array<i64: 1, 4, 256>}]} {
    %c0 = arith.constant 0 : index
    %c0_0 = arith.constant 0 : index
    %0 = vector.load %arg5[%c0, %c0_0] : memref<4x1xf32, #tpu.memory_space<vmem>>, vector<4x1xf32>
    %c0_i32 = arith.constant 0 : i32
    %1 = arith.cmpi eq, %arg0, %c0_i32 : i32
    %2 = arith.extui %1 : i1 to i32
    %c0_i32_1 = arith.constant 0 : i32
    %3 = arith.cmpi ne, %2, %c0_i32_1 : i32
    scf.if %3 {
      %c0_i32_3 = arith.constant 0 : i32
      %7 = arith.cmpi eq, %arg1, %c0_i32_3 : i32
      %c0_i32_4 = arith.constant 0 : i32
      %8 = arith.cmpi eq, %arg2, %c0_i32_4 : i32
      %9 = arith.andi %7, %8 : i1
      %10 = arith.extui %9 : i1 to i32
      %c0_i32_5 = arith.constant 0 : i32
      %11 = arith.cmpi ne, %10, %c0_i32_5 : i32
      scf.if %11 {
        %cst_20 = arith.constant 0.000000e+00 : f32
        %31 = vector.broadcast %cst_20 : f32 to vector<1x256xf32>
        %c0_21 = arith.constant 0 : index
        %c0_22 = arith.constant 0 : index
        %32 = vector.load %arg8[%c0_21, %c0_22] : memref<1x256xf32, #tpu.memory_space<vmem>>, vector<1x256xf32>
        tpu.vector_store %arg8[%c0_21, %c0_22], %31 {strides = array<i32>} : memref<1x256xf32, #tpu.memory_space<vmem>>, vector<1x256xf32>,
        %cst_23 = arith.constant 0.000000e+00 : f32
        %33 = vector.broadcast %cst_23 : f32 to vector<1x256xf32>
        %c0_24 = arith.constant 0 : index
        %c0_25 = arith.constant 0 : index
        %34 = vector.load %arg9[%c0_24, %c0_25] : memref<1x256xf32, #tpu.memory_space<vmem>>, vector<1x256xf32>
        tpu.vector_store %arg9[%c0_24, %c0_25], %33 {strides = array<i32>} : memref<1x256xf32, #tpu.memory_space<vmem>>, vector<1x256xf32>,
      } else {
      }
      %c0_6 = arith.constant 0 : index
      %c0_7 = arith.constant 0 : index
      %c0_8 = arith.constant 0 : index
      %12 = vector.load %arg4[%c0_6, %c0_7, %c0_8] : memref<1x4x256xf32, #tpu.memory_space<vmem>>, vector<1x4x256xf32>
      %13 = vector.shape_cast %12 : vector<1x4x256xf32> to vector<4x256xf32>
      %c1_i32_9 = arith.constant 1 : i32
      %14 = arith.muli %arg1, %c1_i32_9 : i32
      %15 = arith.addi %14, %arg2 : i32
      %16 = arith.index_cast %15 : i32 to index
      %c0_10 = arith.constant 0 : index
      %c0_11 = arith.constant 0 : index
      %17 = vector.load %arg7[%16, %c0_10, %c0_11] : memref<2x4x256xf32, #tpu.memory_space<vmem>>, vector<1x4x256xf32>
      %18 = vector.shape_cast %17 : vector<1x4x256xf32> to vector<4x256xf32>
      %19 = vector.shape_cast %13 : vector<4x256xf32> to vector<1x4x256xf32>
      tpu.vector_store %arg7[%16, %c0_10, %c0_11], %19 {strides = array<i32>} : memref<2x4x256xf32, #tpu.memory_space<vmem>>, vector<1x4x256xf32>,
      %20 = vector.broadcast %0 : vector<4x1xf32> to vector<4x256xf32>
      %21 = arith.mulf %13, %20 : vector<4x256xf32>
      %cst = arith.constant dense<0.000000e+00> : vector<256xf32>
      %22 = vector.multi_reduction <add>, %21, %cst [0] : vector<4x256xf32> to vector<256xf32>
      %23 = vector.shape_cast %22 : vector<256xf32> to vector<1x256xf32>
      %c0_12 = arith.constant 0 : index
      %c0_13 = arith.constant 0 : index
      %24 = vector.load %arg8[%c0_12, %c0_13] : memref<1x256xf32, #tpu.memory_space<vmem>>, vector<1x256xf32>
      %25 = arith.addf %24, %23 : vector<1x256xf32>
      %c0_14 = arith.constant 0 : index
      %c0_15 = arith.constant 0 : index
      %26 = vector.load %arg8[%c0_14, %c0_15] : memref<1x256xf32, #tpu.memory_space<vmem>>, vector<1x256xf32>
      tpu.vector_store %arg8[%c0_14, %c0_15], %25 {strides = array<i32>} : memref<1x256xf32, #tpu.memory_space<vmem>>, vector<1x256xf32>,
      %c0_16 = arith.constant 0 : index
      %c0_17 = arith.constant 0 : index
      %27 = vector.load %arg9[%c0_16, %c0_17] : memref<1x256xf32, #tpu.memory_space<vmem>>, vector<1x256xf32>
      %28 = arith.mulf %23, %23 : vector<1x256xf32>
      %29 = arith.addf %27, %28 : vector<1x256xf32>
      %c0_18 = arith.constant 0 : index
      %c0_19 = arith.constant 0 : index
      %30 = vector.load %arg9[%c0_18, %c0_19] : memref<1x256xf32, #tpu.memory_space<vmem>>, vector<1x256xf32>
      tpu.vector_store %arg9[%c0_18, %c0_19], %29 {strides = array<i32>} : memref<1x256xf32, #tpu.memory_space<vmem>>, vector<1x256xf32>,
    } else {
    }
    %c1_i32 = arith.constant 1 : i32
    %4 = arith.cmpi eq, %arg0, %c1_i32 : i32
    %5 = arith.extui %4 : i1 to i32
    %c0_i32_2 = arith.constant 0 : i32
    %6 = arith.cmpi ne, %5, %c0_i32_2 : i32
    scf.if %6 {
      %c0_i32_3 = arith.constant 0 : i32
      %7 = arith.cmpi eq, %arg1, %c0_i32_3 : i32
      %c0_i32_4 = arith.constant 0 : i32
      %8 = arith.cmpi eq, %arg2, %c0_i32_4 : i32
      %9 = arith.andi %7, %8 : i1
      %10 = arith.extui %9 : i1 to i32
      %c0_i32_5 = arith.constant 0 : i32
      %11 = arith.cmpi ne, %10, %c0_i32_5 : i32
      scf.if %11 {
        %c0_14 = arith.constant 0 : index
        %c0_15 = arith.constant 0 : index
        %37 = vector.load %arg8[%c0_14, %c0_15] : memref<1x256xf32, #tpu.memory_space<vmem>>, vector<1x256xf32>
        %38 = vector.shape_cast %37 : vector<1x256xf32> to vector<1x1x256xf32>
        %cst_16 = arith.constant dense<0.000000e+00> : vector<1xf32>
        %39 = vector.multi_reduction <add>, %38, %cst_16 [1, 2] : vector<1x1x256xf32> to vector<1xf32>
        %40 = vector.shape_cast %39 : vector<1xf32> to vector<1x1x1xf32>
        %41 = vector.extract %40[0, 0, 0] : f32 from vector<1x1x1xf32>
        %cst_17 = arith.constant 5.120000e+02 : f32
        %42 = arith.divf %41, %cst_17 : f32
        %c0_18 = arith.constant 0 : index
        %c0_19 = arith.constant 0 : index
        %43 = vector.load %arg9[%c0_18, %c0_19] : memref<1x256xf32, #tpu.memory_space<vmem>>, vector<1x256xf32>
        %44 = vector.shape_cast %43 : vector<1x256xf32> to vector<1x1x256xf32>
        %cst_20 = arith.constant dense<0.000000e+00> : vector<1xf32>
        %45 = vector.multi_reduction <add>, %44, %cst_20 [1, 2] : vector<1x1x256xf32> to vector<1xf32>
        %46 = vector.shape_cast %45 : vector<1xf32> to vector<1x1x1xf32>
        %47 = vector.extract %46[0, 0, 0] : f32 from vector<1x1x1xf32>
        %cst_21 = arith.constant 5.120000e+02 : f32
        %48 = arith.divf %47, %cst_21 : f32
        %49 = arith.mulf %42, %42 : f32
        %50 = arith.subf %48, %49 : f32
        %cst_22 = arith.constant 0.000000e+00 : f32
        %51 = arith.maximumf %50, %cst_22 : f32
        %c0_23 = arith.constant 0 : index
        %52 = memref.load %arg3[%c0_23] : memref<3xf32, #tpu.memory_space<smem>>
        %c2 = arith.constant 2 : index
        %53 = memref.load %arg3[%c2] : memref<3xf32, #tpu.memory_space<smem>>
        %54 = arith.addf %51, %53 : f32
        %55 = math.rsqrt %54 : f32
        %56 = arith.mulf %52, %55 : f32
        %c0_24 = arith.constant 0 : index
        %57 = memref.load %arg10[%c0_24] : memref<2xf32, #tpu.memory_space<smem>>
        memref.store %56, %arg10[%c0_24] : memref<2xf32, #tpu.memory_space<smem>>
        %c1_25 = arith.constant 1 : index
        %58 = memref.load %arg3[%c1_25] : memref<3xf32, #tpu.memory_space<smem>>
        %59 = arith.mulf %42, %56 : f32
        %60 = arith.subf %58, %59 : f32
        %c1_26 = arith.constant 1 : index
        %61 = memref.load %arg10[%c1_26] : memref<2xf32, #tpu.memory_space<smem>>
        memref.store %60, %arg10[%c1_26] : memref<2xf32, #tpu.memory_space<smem>>
      } else {
      }
      %c1_i32_6 = arith.constant 1 : i32
      %12 = arith.muli %arg1, %c1_i32_6 : i32
      %13 = arith.addi %12, %arg2 : i32
      %14 = arith.index_cast %13 : i32 to index
      %c0_7 = arith.constant 0 : index
      %c0_8 = arith.constant 0 : index
      %15 = vector.load %arg7[%14, %c0_7, %c0_8] : memref<2x4x256xf32, #tpu.memory_space<vmem>>, vector<1x4x256xf32>
      %16 = vector.shape_cast %15 : vector<1x4x256xf32> to vector<4x256xf32>
      %17 = vector.broadcast %0 : vector<4x1xf32> to vector<4x256xf32>
      %18 = arith.mulf %16, %17 : vector<4x256xf32>
      %cst = arith.constant dense<0.000000e+00> : vector<256xf32>
      %19 = vector.multi_reduction <add>, %18, %cst [0] : vector<4x256xf32> to vector<256xf32>
      %20 = vector.shape_cast %19 : vector<256xf32> to vector<1x256xf32>
      %c0_9 = arith.constant 0 : index
      %21 = memref.load %arg10[%c0_9] : memref<2xf32, #tpu.memory_space<smem>>
      %22 = vector.broadcast %21 : f32 to vector<1x256xf32>
      %23 = arith.mulf %20, %22 : vector<1x256xf32>
      %c1 = arith.constant 1 : index
      %24 = memref.load %arg10[%c1] : memref<2xf32, #tpu.memory_space<smem>>
      %25 = vector.broadcast %24 : f32 to vector<1x256xf32>
      %26 = arith.addf %23, %25 : vector<1x256xf32>
      %27 = arith.negf %26 : vector<1x256xf32>
      %28 = math.exp %27 : vector<1x256xf32>
      %cst_10 = arith.constant 1.000000e+00 : f32
      %29 = vector.broadcast %cst_10 : f32 to vector<1x256xf32>
      %30 = arith.addf %29, %28 : vector<1x256xf32>
      %31 = arith.divf %29, %30 : vector<1x256xf32>
      %32 = vector.broadcast %31 : vector<1x256xf32> to vector<4x256xf32>
      %33 = arith.mulf %16, %32 : vector<4x256xf32>
      %c0_11 = arith.constant 0 : index
      %c0_12 = arith.constant 0 : index
      %c0_13 = arith.constant 0 : index
      %34 = vector.load %arg6[%c0_11, %c0_12, %c0_13] : memref<1x4x256xf32, #tpu.memory_space<vmem>>, vector<1x4x256xf32>
      %35 = vector.shape_cast %34 : vector<1x4x256xf32> to vector<4x256xf32>
      %36 = vector.shape_cast %33 : vector<4x256xf32> to vector<1x4x256xf32>
      tpu.vector_store %arg6[%c0_11, %c0_12, %c0_13], %36 {strides = array<i32>} : memref<1x4x256xf32, #tpu.memory_space<vmem>>, vector<1x4x256xf32>,
    } else {
    }
    return
  }
  func.func @transform_0(%arg0: i32, %arg1: i32, %arg2: i32, %arg3: memref<3xf32, #tpu.memory_space<smem>>) -> (i32, i32, i32) {
    %c1_i32 = arith.constant 1 : i32
    %0 = arith.subi %c1_i32, %arg0 : i32
    %1 = arith.muli %arg1, %0 : i32
    %c1_i32_0 = arith.constant 1 : i32
    %2 = arith.muli %c1_i32_0, %arg0 : i32
    %3 = arith.addi %1, %2 : i32
    %c1_i32_1 = arith.constant 1 : i32
    %4 = arith.subi %c1_i32_1, %arg0 : i32
    %5 = arith.muli %arg2, %4 : i32
    %c0_i32 = arith.constant 0 : i32
    %6 = arith.muli %c0_i32, %arg0 : i32
    %7 = arith.addi %5, %6 : i32
    %c0_i32_2 = arith.constant 0 : i32
    %c0_i32_3 = arith.constant 0 : i32
    return %3, %c0_i32_2, %7 : i32, i32, i32
  }
  func.func @transform_1(%arg0: i32, %arg1: i32, %arg2: i32, %arg3: memref<3xf32, #tpu.memory_space<smem>>) -> (i32, i32) {
    %c0_i32 = arith.constant 0 : i32
    %c0_i32_0 = arith.constant 0 : i32
    %c0_i32_1 = arith.constant 0 : i32
    return %c0_i32, %c0_i32_0 : i32, i32
  }
  func.func @transform_2(%arg0: i32, %arg1: i32, %arg2: i32, %arg3: memref<3xf32, #tpu.memory_space<smem>>) -> (i32, i32, i32) {
    %0 = arith.muli %arg1, %arg0 : i32
    %1 = arith.muli %arg2, %arg0 : i32
    %c0_i32 = arith.constant 0 : i32
    %c0_i32_0 = arith.constant 0 : i32
    return %0, %c0_i32, %1 : i32, i32, i32
  }
}

</mosaic_0001>

<llo_original>
// kernel: global_attention.1
$region0: #{global_attention.1}
  #allocation0 [shape = 'u32[]', space=smem, size = 0x4, offset = 0x4, fixed_abs, tag = 'smem constant byte address 0x4 - core index']
  #allocation1 [shape = 'u32[72,128]{1,0:T(1,128)}', space=vmem, size = 0x9000, scoped, tag = 'internal scratch']
  #allocation2 [shape = 'f32[2,4,256]{2,1,0:T(4,128)}', space=vmem, size = 0x2000, scoped, tag = 'scratch operand']
  #allocation3 [shape = 'f32[1,256]{1,0:T(1,128)}', space=vmem, size = 0x400, scoped, tag = 'scratch operand']
  #allocation4 [shape = 'f32[1,256]{1,0:T(1,128)}', space=vmem, size = 0x400, scoped, tag = 'scratch operand']
  #allocation5 [shape = 'f32[2]{0:T(128)}', space=smem, size = 0x200, scoped, tag = 'scratch operand']
  #allocation6 [shape = 's32[1]{0}', space=sflag, size = 0x4, scoped, tag = 'scoped memory for global_attention.1']
  #allocation7 [shape = 'u8[512]{0}', space=smem, size = 0x200, scoped, tag = 'prefetched SMEM operand 0']
  %s0 = inlined_call_operand.vmem [shape: f32[3], index: 0, kind: input, shape index: {}]
  %s1 = inlined_call_operand.vmem [shape: f32[2,4,256], index: 1, kind: input, shape index: {}]
  %s2 = inlined_call_operand.vmem [shape: f32[4,1], index: 2, kind: input, shape index: {}]
  %s3 = inlined_call_operand.vmem [shape: f32[2,4,256], index: 3, kind: output, shape index: {}]
  %s4 = sld [smem:[#allocation0]]
  $region57: #{global_attention.1} parent=0
    _
  %s6 = ssub.s32 1, %s4
  %s7 = scalar_select 0, %s6, %s4
  %s9 = sshll.u32 %s0, 4
  %s10 = int_to_ptr.vmem [resolvable:$true] %s9
  %12 = dma.vmem_to_smem %s10, 16, [#allocation7], [#allocation6]
  %14 = dma.done [#allocation6], 16
  %15 = sfence
  loop: start=0, step=1, limit=6
  $region2: #{global_attention.1} parent=0 // loop_pre_header
    _
  $region3: #{global_attention.1} parent=0 // loop_header
    %s17 = sphi 0, %s21
    %p18 = scmp.ge.s32.totalorder %s17, 6
    %s24 = sphi 0, %s43
    %s25 = sphi 0, %s39
    %s26 = sphi 0, %s35
    %s27 = sphi 0, %s24
    %s28 = sphi 0, %s25
    %s29 = sphi 0, %s26
    %s30 = sphi 0, %s27
    %s31 = sphi 0, %s28
    %s32 = sphi 0, %s29
    %s56 = sphi 0, %s58
    %s59 = sphi 0, %s56
    %s60 = sphi 0, %s59
    %s76 = sphi 0, %s60
    %s80 = sphi 0, %s80
    %s82 = sphi 0, %s80
    %s83 = sphi 0, %s82
    %s97 = sphi 0, %s83
    %s109 = sphi 0, %s111
    %s112 = sphi 0, %s109
    %s113 = sphi 0, %s112
    %s129 = sphi 0, %s113
  $region4: #{global_attention.1} parent=0 // loop_header_branch
    %20 = sbr.rel (%p18) target = $region8
  $region5: #{global_attention.1} parent=0 // loop_body
    %s22 = ssub.s32 %s17, 1
    %s23 = ssub.s32 %s17, 2
    %s33 = sadd.s32 1, %s26
    %p34 = scmp.ge.s32.totalorder %s33, 1
    %s35 = scalar_select %p34, 0, %s33
    %s36 = sadd.s32 1, %s25
    %s37 = scalar_select %p34, %s36, %s25
    %p38 = scmp.ge.s32.totalorder %s37, 2
    %s39 = scalar_select %p38, 0, %s37
    %s40 = sadd.s32 1, %s24
    %s41 = scalar_select %p38, %s40, %s24
    %p42 = scmp.ge.s32.totalorder %s41, 2
    %s43 = scalar_select %p42, 0, %s41
    %s44 = ssub.s32 1, %s24
    %s45 = smul.u32 %s25, %s44
    %s46 = sadd.s32 %s45, %s24
    %s47 = smul.u32 %s26, %s44
    %s48 = ssub.s32 1, %s43
    %s49 = smul.u32 %s39, %s48
    %s50 = sadd.s32 %s49, %s43
    %s51 = smul.u32 %s35, %s48
    %s52 = ssub.s32 %s46, %s50
    %s53 = ssub.s32 %s47, %s51
    %s54 = sor.u32 %s52, %s53
    %p55 = scmp.eq.s32.totalorder %s54, 0
    %s57 = sadd.s32 %s56, 1
    %s58 = scalar_select %p55, %s56, %s57
    %p61 = pneg %p55
    %p62 = scmp.eq.s32.totalorder %s17, 3
    %p63 = por %p61, %p62
    %p64 = scmp.ne.s32.totalorder %s56, %s59
    %p65 = scmp.eq.s32.totalorder %s17, 0
    %p66 = por %p64, %p65
    %p67 = scmp.ne.s32.totalorder %s56, %s59
    %p68 = scmp.eq.s32.totalorder %s22, 3
    %p69 = por %p67, %p68
    %p70 = scmp.ne.s32.totalorder %s59, %s60
    %p71 = scmp.eq.s32.totalorder %s22, 0
    %p72 = por %p70, %p71
    %p73 = scmp.ne.s32.totalorder %s59, %s60
    %p74 = scmp.eq.s32.totalorder %s23, 3
    %p75 = por %p73, %p74
    %p77 = scmp.ne.s32.totalorder %s60, %s76
    %p78 = scmp.eq.s32.totalorder %s23, 0
    %p79 = por %p77, %p78
    %s81 = sadd.s32 %s80, 1
    %p84 = scmp.eq.s32.totalorder %s17, 3
    %p85 = scmp.ne.s32.totalorder %s80, %s82
    %p86 = scmp.eq.s32.totalorder %s17, 0
    %p87 = por %p85, %p86
    %p88 = scmp.ne.s32.totalorder %s80, %s82
    %p89 = scmp.eq.s32.totalorder %s22, 3
    %p90 = por %p88, %p89
    %p91 = scmp.ne.s32.totalorder %s82, %s83
    %p92 = scmp.eq.s32.totalorder %s22, 0
    %p93 = por %p91, %p92
    %p94 = scmp.ne.s32.totalorder %s82, %s83
    %p95 = scmp.eq.s32.totalorder %s23, 3
    %p96 = por %p94, %p95
    %p98 = scmp.ne.s32.totalorder %s83, %s97
    %p99 = scmp.eq.s32.totalorder %s23, 0
    %p100 = por %p98, %p99
    %s101 = smul.u32 %s25, %s24
    %s102 = smul.u32 %s26, %s24
    %s103 = smul.u32 %s39, %s43
    %s104 = smul.u32 %s35, %s43
    %s105 = ssub.s32 %s101, %s103
    %s106 = ssub.s32 %s102, %s104
    %s107 = sor.u32 %s105, %s106
    %p108 = scmp.eq.s32.totalorder %s107, 0
    %s110 = sadd.s32 %s109, 1
    %s111 = scalar_select %p108, %s109, %s110
    %p114 = pneg %p108
    %p115 = scmp.eq.s32.totalorder %s17, 3
    %p116 = por %p114, %p115
    %p117 = scmp.ne.s32.totalorder %s109, %s112
    %p118 = scmp.eq.s32.totalorder %s17, 0
    %p119 = por %p117, %p118
    %p120 = scmp.ne.s32.totalorder %s109, %s112
    %p121 = scmp.eq.s32.totalorder %s22, 3
    %p122 = por %p120, %p121
    %p123 = scmp.ne.s32.totalorder %s112, %s113
    %p124 = scmp.eq.s32.totalorder %s22, 0
    %p125 = por %p123, %p124
    %p126 = scmp.ne.s32.totalorder %s112, %s113
    %p127 = scmp.eq.s32.totalorder %s23, 3
    %p128 = por %p126, %p127
    %p130 = scmp.ne.s32.totalorder %s113, %s129
    %p131 = scmp.eq.s32.totalorder %s23, 0
    %p132 = por %p130, %p131
    %p133 = scmp.le.s32.totalorder 1, %s17
    %p134 = scmp.lt.s32.totalorder %s17, 5
    %p135 = pnand %p133, %p134
    %p136 = pneg %p135
    // Predicated region
    $region9: #{global_attention.1} parent=5 // pred_check
      _
    $region10: #{global_attention.1} parent=5 // pred_check_branch
      %138 = sbr.rel (%p135) target = $region12
    $region11: #{global_attention.1} parent=5 // pred_region
      %s139 = ssub.s32 %s17, 1
      // Predicated region
      $region13: #{global_attention.1} parent=11 // pred_check
        %p140 = pneg %p93
      $region14: #{global_attention.1} parent=11 // pred_check_branch
        %142 = sbr.rel (%p140) target = $region16
      $region15: #{global_attention.1} parent=11 // pred_region
        _
      $region16: #{global_attention.1} parent=11 // pred_fallthru
        _
    $region12: #{global_attention.1} parent=5 // pred_fallthru
      _
    %p143 = scmp.lt.s32.totalorder %s17, 4
    // Predicated region
    $region17: #{global_attention.1} parent=5 // pred_check
      %p144 = pneg %p143
    $region18: #{global_attention.1} parent=5 // pred_check_branch
      %146 = sbr.rel (%p144) target = $region20
    $region19: #{global_attention.1} parent=5 // pred_region
      // Predicated region
      $region21: #{global_attention.1} parent=19 // pred_check
        %p147 = pneg %p66
      $region22: #{global_attention.1} parent=19 // pred_check_branch
        %149 = sbr.rel (%p147) target = $region24
      $region23: #{global_attention.1} parent=19 // pred_region
        %s150 = ssub.s32 1, %s24
        %s151 = smul.u32 %s25, %s150
        %s152 = sadd.s32 %s151, %s24
        %s153 = smul.u32 %s26, %s150
        %s154 = smul.u32 2, %s153
        %p155 = scmp.lt.s32.totalorder %s152, 1
        %s156 = scalar_select %p155, %s152, 1
        %p157 = scmp.lt.s32.totalorder %s154, 1
        %s158 = scalar_select %p157, %s154, 1
        %s159 = smul.addr %s156, 2
        %s160 = sadd.s32 %s158, %s159
        %s161 = smul.addr %s160, 4
        %s162 = scalar_lea.vmem %s1, %s161
        %s163 = ssub.s32 1, %s24
        %s164 = smul.u32 %s25, %s163
        %s165 = sadd.s32 %s164, %s24
        %s166 = smul.u32 %s26, %s163
        %s167 = smul.u32 2, %s166
      $region24: #{global_attention.1} parent=19 // pred_fallthru
        _
    $region20: #{global_attention.1} parent=5 // pred_fallthru
      _
    %p168 = scmp.le.s32.totalorder 1, %s17
    %p169 = scmp.lt.s32.totalorder %s17, 5
    %p170 = pnand %p168, %p169
    %p171 = pneg %p170
    // Predicated region
    $region25: #{global_attention.1} parent=5 // pred_check
      _
    $region26: #{global_attention.1} parent=5 // pred_check_branch
      %173 = sbr.rel (%p170) target = $region28
    $region27: #{global_attention.1} parent=5 // pred_region
      %s174 = ssub.s32 %s17, 1
      %s175 = ssub.s32 1, %s27
      %s176 = smul.u32 %s28, %s175
      %s177 = sadd.s32 %s176, %s27
      %s178 = smul.u32 %s29, %s175
      %s179 = smul.u32 2, %s178
      %p180 = scmp.lt.s32.totalorder %s177, 1
      %s181 = scalar_select %p180, %s177, 1
      %p182 = scmp.lt.s32.totalorder %s179, 1
      %s183 = scalar_select %p182, %s179, 1
      %s184 = smul.addr %s181, 2
      %s185 = sadd.s32 %s183, %s184
      %s186 = smul.addr %s185, 4
      %s187 = scalar_lea.vmem %s1, %s186
      %p188 = pneg %p72
      %p189 = pneg %p69
      %p190 = pneg %p93
      %p191 = pneg %p90
      %p192 = pneg %p125
      %p193 = pneg %p122
      %s194 = smul.u32 %s28, %s27
      %s195 = smul.u32 %s29, %s27
      %s196 = smul.u32 2, %s195
      %p197 = scmp.lt.s32.totalorder %s194, 1
      %s198 = scalar_select %p197, %s194, 1
      %p199 = scmp.lt.s32.totalorder %s196, 1
      %s200 = scalar_select %p199, %s196, 1
      %s201 = smul.addr %s198, 2
      %s202 = sadd.s32 %s200, %s201
      %s203 = smul.addr %s202, 4
      %s204 = scalar_lea.vmem %s3, %s203
      %s205 = ssub.s32 1, %s27
      %s206 = smul.u32 %s28, %s205
      %s207 = sadd.s32 %s206, %s27
      %s208 = smul.u32 %s29, %s205
      %s209 = smul.u32 2, %s208
      %p210 = scmp.lt.s32.totalorder %s207, 1
      %s211 = scalar_select %p210, %s207, 1
      %p212 = scmp.lt.s32.totalorder %s209, 1
      %s213 = scalar_select %p212, %s209, 1
      %s214 = smul.addr %s211, 2
      %s215 = sadd.s32 %s213, %s214
      %s216 = smul.addr %s215, 4
      %s217 = scalar_lea.vmem %s1, %s216
      %s218 = ssub.s32 1, %s27
      %s219 = smul.u32 %s28, %s218
      %s220 = sadd.s32 %s219, %s27
      %s221 = smul.u32 %s29, %s218
      %s222 = smul.u32 2, %s221
      %s223 = smul.u32 %s28, %s27
      %s224 = smul.u32 %s29, %s27
      %s225 = smul.u32 2, %s224
      %p226 = scmp.lt.s32.totalorder %s223, 1
      %s227 = scalar_select %p226, %s223, 1
      %p228 = scmp.lt.s32.totalorder %s225, 1
      %s229 = scalar_select %p228, %s225, 1
      %s230 = smul.addr %s227, 2
      %s231 = sadd.s32 %s229, %s230
      %s232 = smul.addr %s231, 4
      %s233 = scalar_lea.vmem %s3, %s232
      %s234 = smul.u32 %s28, %s27
      %s235 = smul.u32 %s29, %s27
      %s236 = smul.u32 2, %s235
      %v237 = vld [vmem:[%s2] sm:$0xf]
      %p238 = scmp.eq.s32.totalorder %s27, 0
      // Predicated region
      $region29: #{global_attention.1} parent=27 // pred_check
        %p239 = pneg %p238
      $region30: #{global_attention.1} parent=27 // pred_check_branch
        %241 = sbr.rel (%p239) target = $region32
      $region31: #{global_attention.1} parent=27 // pred_region
        %p242 = scmp.eq.s32.totalorder %s28, 0
        %p243 = scmp.eq.s32.totalorder %s29, 0
        %p244 = pnand %p242, %p243
        %p245 = pneg %p244
        // Predicated region
        $region33: #{global_attention.1} parent=31 // pred_check
          _
        $region34: #{global_attention.1} parent=31 // pred_check_branch
          %247 = sbr.rel (%p244) target = $region36
        $region35: #{global_attention.1} parent=31 // pred_region
          %v248 = vlaneseq
          %vm249 = vcmp.ge.s32.totalorder %v248, 0
          %vm250 = vcmp.lt.s32.totalorder %v248, 256
          %vm251 = vmand %vm249, %vm250
          %252 = vst.msk [vmem:[#allocation3] sm:$0x3] %vm251, 0.0
          %253 = vst.msk [vmem:[#allocation4] sm:$0x3] %vm251, 0.0
        $region36: #{global_attention.1} parent=31 // pred_fallthru
          _
        %v254 = vld [vmem:[%s217] sm:$0xff]
        %s255 = sadd.s32 %s28, %s29
        %s256 = smul.u32 %s255, 2
        %s257 = smul.addr %s256, 4
        %s258 = scalar_lea.vmem [#allocation2], %s257
        %259 = vst [vmem:[%s258] sm:$0xff] %v254
        %261 = vset.pattern.permute.xlu0 0
        %262 = vperm.xlu0 %261, %v237
        %v263 = vpop.permute.xlu0 %262
        %v265 = vunpack.c.l.s4 839922192
        %v266 = vunpack.c.0.s8 %v265
        %v267 = vperm.slane %v263, %v266
        %v269 = vmul.f32 %v254, %v267
        %271 = vst [vmem:[#allocation1] ss:$2 sm:$0xff] %v269
        %v272 = vld.sshfl [vmem:[#allocation1] sm:$0xff pattern:$0x75316420]
        %v273 = vld.sshfl [vmem:[#allocation1 + $0x8] sm:$0xff pattern:$0x75316420]
        %vm276 = vcmask 1043456
        %v277 = vsel %vm276, %v272, 0.0
        %v278 = vrot.slane %v277, 4
        %v279 = vadd.f32 %v277, %v278
        %v280 = vrot.slane %v279, 2
        %v281 = vadd.f32 %v279, %v280
        %v282 = vrot.slane %v281, 1
        %v283 = vadd.f32 %v281, %v282
        %v284 = vsel %vm276, %v273, 0.0
        %v285 = vrot.slane %v284, 4
        %v286 = vadd.f32 %v284, %v285
        %v287 = vrot.slane %v286, 2
        %v288 = vadd.f32 %v286, %v287
        %v289 = vrot.slane %v288, 1
        %v290 = vadd.f32 %v288, %v289
        %v291 = vld [vmem:[#allocation3] sm:$0x3]
        %v294 = vrot.slane %v290, 7
        %vm295 = vcmask 1040384
        %v296 = vsel %vm295, %v283, %v294
        %v298 = vadd.f32 %v291, %v296
        %v299 = vlaneseq
        %vm300 = vcmp.ge.s32.totalorder %v299, 0
        %vm301 = vcmp.lt.s32.totalorder %v299, 256
        %vm302 = vmand %vm300, %vm301
        %303 = vst.msk [vmem:[#allocation3] sm:$0x3] %vm302, %v298
        %v304 = vld [vmem:[#allocation4] sm:$0x3]
        %v305 = vmul.f32 %v283, %v283
        %v306 = vmul.f32 %v290, %v290
        %v309 = vrot.slane %v306, 7
        %v310 = vsel %vm295, %v305, %v309
        %v312 = vadd.f32 %v304, %v310
        %313 = vst.msk [vmem:[#allocation4] sm:$0x3] %vm302, %v312
      $region32: #{global_attention.1} parent=27 // pred_fallthru
        _
      %p314 = scmp.eq.s32.totalorder %s27, 1
      // Predicated region
      $region37: #{global_attention.1} parent=27 // pred_check
        %p315 = pneg %p314
      $region38: #{global_attention.1} parent=27 // pred_check_branch
        %317 = sbr.rel (%p315) target = $region40
      $region39: #{global_attention.1} parent=27 // pred_region
        %p318 = scmp.eq.s32.totalorder %s28, 0
        %p319 = scmp.eq.s32.totalorder %s29, 0
        %p320 = pnand %p318, %p319
        %p321 = pneg %p320
        // Predicated region
        $region41: #{global_attention.1} parent=39 // pred_check
          _
        $region42: #{global_attention.1} parent=39 // pred_check_branch
          %323 = sbr.rel (%p320) target = $region44
        $region43: #{global_attention.1} parent=39 // pred_region
          %v324 = vld [vmem:[#allocation3] sm:$0x3]
          %v326 = vperm.slane %v324, 0
          %v327 = vperm.slane %v324, 1
          %vm330 = vcmask 1040384
          %v331 = vsel %vm330, %v326, 0.0
          %v332 = vsel %vm330, %v327, 0.0
          %v333 = vadd.f32 %v331, %v332
          %334 = vadd.xlane.f32.xlu0 %v333
          %v335 = vpop.xlane.xlu0 %334
          %v336 = vrot.slane %v335, 4
          %v337 = vadd.f32 %v335, %v336
          %v338 = vrot.slane %v337, 2
          %v339 = vadd.f32 %v337, %v338
          %v340 = vrot.slane %v339, 1
          %v341 = vadd.f32 %v339, %v340
          %s342 = vtos %v341
          %v343 = vrcp.pop 512.0
          %v344 = vmul.f32 512.0, %v343
          %v345 = vsub.f32 1.0, %v344
          %v346 = vmul.f32 %v343, %v345
          %v347 = vadd.f32 %v343, %v346
          %vm348 = vweird.f32 %v343
          %v349 = vsel %vm348, %v343, %v347
          %s350 = vtos %v349
          %s351 = smul.f32 %s342, %s350
          %v352 = vld [vmem:[#allocation4] sm:$0x3]
          %v354 = vperm.slane %v352, 0
          %v355 = vperm.slane %v352, 1
          %v358 = vsel %vm330, %v354, 0.0
          %v359 = vsel %vm330, %v355, 0.0
          %v360 = vadd.f32 %v358, %v359
          %361 = vadd.xlane.f32.xlu0 %v360
          %v362 = vpop.xlane.xlu0 %361
          %v363 = vrot.slane %v362, 4
          %v364 = vadd.f32 %v362, %v363
          %v365 = vrot.slane %v364, 2
          %v366 = vadd.f32 %v364, %v365
          %v367 = vrot.slane %v366, 1
          %v368 = vadd.f32 %v366, %v367
          %s369 = vtos %v368
          %v370 = vrcp.pop 512.0
          %v371 = vmul.f32 512.0, %v370
          %v372 = vsub.f32 1.0, %v371
          %v373 = vmul.f32 %v370, %v372
          %v374 = vadd.f32 %v370, %v373
          %vm375 = vweird.f32 %v370
          %v376 = vsel %vm375, %v370, %v374
          %s377 = vtos %v376
          %s378 = smul.f32 %s369, %s377
          %s379 = smul.f32 %s351, %s351
          %s380 = ssub.f32 %s378, %s379
          %s381 = smax.f32 %s380, 0.0
          %s382 = sld [smem:[#allocation7]]
          %s383 = sld [smem:[#allocation7 + $0x2]]
          %s384 = sadd.f32 %s381, %s383
          %v385 = vstv %s384
          %v386 = vrsqrt.pop %v385
          %v387 = vmul.f32 %v386, %v385
          %v388 = vmul.f32 %v387, %v386
          %v389 = vmul.f32 0.5, %v388
          %v390 = vsub.f32 1.5, %v389
          %v391 = vmul.f32 %v386, %v390
          %vm392 = vweird.f32 %v385
          %vm393 = vweird.f32 %v386
          %vm394 = vmor %vm392, %vm393
          %v395 = vsel %vm394, %v386, %v391
          %s396 = vtos %v395
          %s397 = smul.f32 %s382, %s396
          %s398 = scalar_lea.smem [#allocation5], 0
          %399 = sst [smem:[%s398]] %s397
          %s400 = sld [smem:[#allocation7 + $0x1]]
          %s401 = smul.f32 %s351, %s397
          %s402 = ssub.f32 %s400, %s401
          %s403 = scalar_lea.smem [#allocation5], 1
          %404 = sst [smem:[%s403]] %s402
        $region44: #{global_attention.1} parent=39 // pred_fallthru
          _
        %s405 = sadd.s32 %s28, %s29
        %s406 = smul.u32 %s405, 2
        %s407 = smul.addr %s406, 4
        %s408 = scalar_lea.vmem [#allocation2], %s407
        %v409 = vld [vmem:[%s408] sm:$0xff]
        %411 = vset.pattern.permute.xlu0 0
        %412 = vperm.xlu0 %411, %v237
        %v413 = vpop.permute.xlu0 %412
        %v415 = vunpack.c.l.s4 839922192
        %v416 = vunpack.c.0.s8 %v415
        %v417 = vperm.slane %v413, %v416
        %v419 = vmul.f32 %v409, %v417
        %421 = vst [vmem:[#allocation1] ss:$2 sm:$0xff] %v419
        %v422 = vld.sshfl [vmem:[#allocation1] sm:$0xff pattern:$0x75316420]
        %v423 = vld.sshfl [vmem:[#allocation1 + $0x8] sm:$0xff pattern:$0x75316420]
        %vm426 = vcmask 1043456
        %v427 = vsel %vm426, %v422, 0.0
        %v428 = vrot.slane %v427, 4
        %v429 = vadd.f32 %v427, %v428
        %v430 = vrot.slane %v429, 2
        %v431 = vadd.f32 %v429, %v430
        %v432 = vrot.slane %v431, 1
        %v433 = vadd.f32 %v431, %v432
        %v434 = vsel %vm426, %v423, 0.0
        %v435 = vrot.slane %v434, 4
        %v436 = vadd.f32 %v434, %v435
        %v437 = vrot.slane %v436, 2
        %v438 = vadd.f32 %v436, %v437
        %v439 = vrot.slane %v438, 1
        %v440 = vadd.f32 %v438, %v439
        %s441 = sld [smem:[#allocation5]]
        %v442 = vstv %s441
        %v443 = vmul.f32 %v433, %v442
        %v444 = vmul.f32 %v440, %v442
        %s445 = sld [smem:[#allocation5 + $0x1]]
        %v446 = vstv %s445
        %v447 = vadd.f32 %v443, %v446
        %v448 = vadd.f32 %v444, %v446
        %v449 = vxor.u32 %v447, 2147483648
        %v450 = vxor.u32 %v448, 2147483648
        %v451 = vmul.f32 %v449, 1.442695
        %v452 = vpow.pop %v451
        %v453 = vmul.f32 %v450, 1.442695
        %v454 = vpow.pop %v453
        %v455 = vadd.f32 %v452, 1.0
        %v456 = vadd.f32 %v454, 1.0
        %v457 = vrcp.pop %v455
        %v458 = vmul.f32 %v455, %v457
        %v459 = vsub.f32 1.0, %v458
        %v460 = vmul.f32 %v457, %v459
        %v461 = vadd.f32 %v457, %v460
        %vm462 = vweird.f32 %v455
        %vm463 = vweird.f32 %v457
        %vm464 = vmor %vm462, %vm463
        %v465 = vsel %vm464, %v457, %v461
        %v466 = vand.u32 2147483647, %v455
        %vm467 = vcmp.eq.f32.partialorder %v466, 8.507059e+37
        %v468 = vand.u32 %v455, 2147483648
        %v469 = vor.u32 1.1754944e-38, %v468
        %v470 = vsel %vm467, %v469, %v465
        %v471 = vmul.f32 1.0, %v470
        %v472 = vrcp.pop %v456
        %v473 = vmul.f32 %v456, %v472
        %v474 = vsub.f32 1.0, %v473
        %v475 = vmul.f32 %v472, %v474
        %v476 = vadd.f32 %v472, %v475
        %vm477 = vweird.f32 %v456
        %vm478 = vweird.f32 %v472
        %vm479 = vmor %vm477, %vm478
        %v480 = vsel %vm479, %v472, %v476
        %v481 = vand.u32 2147483647, %v456
        %vm482 = vcmp.eq.f32.partialorder %v481, 8.507059e+37
        %v483 = vand.u32 %v456, 2147483648
        %v484 = vor.u32 1.1754944e-38, %v483
        %v485 = vsel %vm482, %v484, %v480
        %v486 = vmul.f32 1.0, %v485
        %v489 = vrot.slane %v486, 4
        %v490 = vsel %vm426, %v471, %v489
        %v492 = vmul.f32 %v409, %v490
        %493 = vst [vmem:[%s233] sm:$0xff] %v492
      $region40: #{global_attention.1} parent=27 // pred_fallthru
        _
      %s494 = smul.u32 %s28, %s27
      %s495 = smul.u32 %s29, %s27
      %s496 = smul.u32 2, %s495
      %p497 = scmp.lt.s32.totalorder %s494, 1
      %s498 = scalar_select %p497, %s494, 1
      %p499 = scmp.lt.s32.totalorder %s496, 1
      %s500 = scalar_select %p499, %s496, 1
      %s501 = smul.addr %s498, 2
      %s502 = sadd.s32 %s500, %s501
      %s503 = smul.addr %s502, 4
      %s504 = scalar_lea.vmem %s3, %s503
      // Predicated region
      $region45: #{global_attention.1} parent=27 // pred_check
        %p505 = pneg %p122
      $region46: #{global_attention.1} parent=27 // pred_check_branch
        %507 = sbr.rel (%p505) target = $region48
      $region47: #{global_attention.1} parent=27 // pred_region
        %s508 = smul.u32 %s28, %s27
        %s509 = smul.u32 %s29, %s27
        %s510 = smul.u32 2, %s509
      $region48: #{global_attention.1} parent=27 // pred_fallthru
        _
    $region28: #{global_attention.1} parent=5 // pred_fallthru
      _
    %p511 = scmp.le.s32.totalorder 2, %s17
    // Predicated region
    $region49: #{global_attention.1} parent=5 // pred_check
      %p512 = pneg %p511
    $region50: #{global_attention.1} parent=5 // pred_check_branch
      %514 = sbr.rel (%p512) target = $region52
    $region51: #{global_attention.1} parent=5 // pred_region
      %s515 = ssub.s32 %s17, 2
      // Predicated region
      $region53: #{global_attention.1} parent=51 // pred_check
        %p516 = pneg %p128
      $region54: #{global_attention.1} parent=51 // pred_check_branch
        %518 = sbr.rel (%p516) target = $region56
      $region55: #{global_attention.1} parent=51 // pred_region
        %s519 = smul.u32 %s31, %s30
        %s520 = smul.u32 %s32, %s30
        %s521 = smul.u32 2, %s520
        %p522 = scmp.lt.s32.totalorder %s519, 1
        %s523 = scalar_select %p522, %s519, 1
        %p524 = scmp.lt.s32.totalorder %s521, 1
        %s525 = scalar_select %p524, %s521, 1
        %s526 = smul.addr %s523, 2
        %s527 = sadd.s32 %s525, %s526
        %s528 = smul.addr %s527, 4
        %s529 = scalar_lea.vmem %s3, %s528
      $region56: #{global_attention.1} parent=51 // pred_fallthru
        _
    $region52: #{global_attention.1} parent=5 // pred_fallthru
      _
  $region6: #{global_attention.1} parent=0 // loop_footer
    %s21 = sadd.s32 1, %s17
  $region7: #{global_attention.1} parent=0 // loop_footer_branch
    %16 = sbr.rel target = $region3
  $region8: #{global_attention.1} parent=0 // loop_exit
    _

</llo_original>
